<compile_context>
chip_gen: v6e
topology: v6e:2x2x1
jax: 0.10.0
libtpu: 0.0.40
codegen_flags: <defaults>
</compile_context>

<pallas_src>
import functools
import math

import numpy as np
import jax
import jax.numpy as jnp
from jax.experimental import pallas as pl
from jax.experimental.pallas import tpu as pltpu


# ------------------------------- helpers -------------------------------------

def _tile(dim, target):
    """Pick `target` if it evenly divides dim, else fall back to the full dim."""
    if dim <= target:
        return dim
    if dim % target == 0:
        return target
    return dim


# ------------------------------- kernels -------------------------------------

def _norm_linear_bias_kernel(x_ref, lnw_ref, w_ref, b_ref, o_ref, *, eps):
    # fused RMSNorm (per row tile) + matmul + bias epilogue (f32 accumulation)
    x = x_ref[...].astype(jnp.float32)                             # (tm, K)
    var = jnp.mean(x * x, axis=-1, keepdims=True)
    xn = x * jax.lax.rsqrt(var + eps) * lnw_ref[...].astype(jnp.float32)
    acc = jnp.dot(xn.astype(w_ref.dtype), w_ref[...],
                  preferred_element_type=jnp.float32)
    acc = acc + b_ref[...].astype(jnp.float32)
    o_ref[...] = acc.astype(o_ref.dtype)


def _norm_gate_up_silu_kernel(x_ref, lnw_ref, gw_ref, uw_ref, o_ref, *, eps):
    # fused RMSNorm + gate_proj + up_proj + SiLU(gate)*up epilogue (f32)
    x = x_ref[...].astype(jnp.float32)
    var = jnp.mean(x * x, axis=-1, keepdims=True)
    xn = (x * jax.lax.rsqrt(var + eps) * lnw_ref[...].astype(jnp.float32))
    xn = xn.astype(gw_ref.dtype)
    g = jnp.dot(xn, gw_ref[...], preferred_element_type=jnp.float32)
    u = jnp.dot(xn, uw_ref[...], preferred_element_type=jnp.float32)
    o_ref[...] = (g * jax.nn.sigmoid(g) * u).astype(o_ref.dtype)


def _matmul_residual_kernel(x_ref, w_ref, r_ref, o_ref, acc_ref):
    # K-tiled matmul with f32 VMEM accumulator and fused residual-add epilogue
    k = pl.program_id(2)

    @pl.when(k == 0)
    def _():
        acc_ref[...] = jnp.zeros_like(acc_ref[...])

    acc_ref[...] += jnp.dot(x_ref[...], w_ref[...],
                            preferred_element_type=jnp.float32)

    @pl.when(k == pl.num_programs(2) - 1)
    def _():
        o_ref[...] = (acc_ref[...]
                      + r_ref[...].astype(jnp.float32)).astype(o_ref.dtype)


def _rope_kernel(x_ref, cos_ref, sin_ref, o_ref):
    # sin_ref already carries the rotate_half sign, so
    #   rope(x) = x*cos + [x2, x1]*sin_signed  ==  x*cos + rotate_half(x)*sin
    x = x_ref[0, 0].astype(jnp.float32)          # (tq, D)
    cos = cos_ref[0].astype(jnp.float32)
    sin = sin_ref[0].astype(jnp.float32)
    d = x.shape[-1]
    half = d // 2
    if d % 128 == 0:
        rot = pltpu.roll(x, shift=half, axis=-1)   # XLU op, lane-dense head_dim
    else:
        rot = jnp.concatenate([x[:, half:], x[:, :half]], axis=-1)
    o_ref[0, 0] = (x * cos + rot * sin).astype(o_ref.dtype)


def _flash_attn_kernel(q_ref, k_ref, v_ref, o_ref, m_sc, l_sc, acc_sc, *, scale):
    kv = pl.program_id(3)

    @pl.when(kv == 0)
    def _():
        m_sc[...] = jnp.full_like(m_sc[...], -jnp.inf)
        l_sc[...] = jnp.zeros_like(l_sc[...])
        acc_sc[...] = jnp.zeros_like(acc_sc[...])

    q = q_ref[0, 0].astype(jnp.float32)          # (tq, D)
    k = k_ref[0, 0].astype(jnp.float32)          # (tkv, D)

    s = jnp.dot(q, k.T, preferred_element_type=jnp.float32) * scale   # (tq, tkv)
    # TODO(synk): causal/padding masks would be applied to `s` here; the
    # reference module as written applies no attention mask, so none is used.
    m_new = jnp.maximum(m_sc[...], s.max(axis=-1, keepdims=True))
    alpha = jnp.exp(m_sc[...] - m_new)
    p = jnp.exp(s - m_new)
    l_sc[...] = alpha * l_sc[...] + p.sum(axis=-1, keepdims=True)
    pv = jnp.dot(p.astype(v_ref.dtype), v_ref[0, 0],
                 preferred_element_type=jnp.float32)
    acc_sc[...] = alpha * acc_sc[...] + pv
    m_sc[...] = m_new

    @pl.when(kv == pl.num_programs(3) - 1)
    def _():
        inv = pl.reciprocal(l_sc[...], approx=True)
        o_ref[0, 0] = (acc_sc[...] * inv).astype(o_ref.dtype)


# ------------------------------- wrappers -------------------------------------

def norm_linear_bias(x2d, ln_w, w_t, bias, eps, tm=256, tn=256):
    M, K = x2d.shape
    N = w_t.shape[1]
    tm, tn = _tile(M, tm), _tile(N, tn)
    return pl.pallas_call(
        functools.partial(_norm_linear_bias_kernel, eps=eps),
        out_shape=jax.ShapeDtypeStruct((M, N), x2d.dtype),
        grid=(M // tm, N // tn),
        in_specs=[
            pl.BlockSpec((tm, K), lambda i, j: (i, 0)),
            pl.BlockSpec((1, K), lambda i, j: (0, 0)),
            pl.BlockSpec((K, tn), lambda i, j: (0, j)),
            pl.BlockSpec((1, tn), lambda i, j: (0, j)),
        ],
        out_specs=pl.BlockSpec((tm, tn), lambda i, j: (i, j)),
        compiler_params=pltpu.CompilerParams(
            dimension_semantics=("parallel", "parallel")),
    )(x2d, ln_w.reshape(1, K), w_t, bias.reshape(1, N))


def norm_gate_up_silu(x2d, ln_w, gate_w, up_w, eps, tm=256, tn=256):
    M, K = x2d.shape
    N = gate_w.shape[1]
    tm, tn = _tile(M, tm), _tile(N, tn)
    return pl.pallas_call(
        functools.partial(_norm_gate_up_silu_kernel, eps=eps),
        out_shape=jax.ShapeDtypeStruct((M, N), x2d.dtype),
        grid=(M // tm, N // tn),
        in_specs=[
            pl.BlockSpec((tm, K), lambda i, j: (i, 0)),
            pl.BlockSpec((1, K), lambda i, j: (0, 0)),
            pl.BlockSpec((K, tn), lambda i, j: (0, j)),
            pl.BlockSpec((K, tn), lambda i, j: (0, j)),
        ],
        out_specs=pl.BlockSpec((tm, tn), lambda i, j: (i, j)),
        compiler_params=pltpu.CompilerParams(
            dimension_semantics=("parallel", "parallel")),
    )(x2d, ln_w.reshape(1, K), gate_w, up_w)


def matmul_residual(x2d, w_t, residual, tm=256, tn=256, tk=512):
    M, K = x2d.shape
    N = w_t.shape[1]
    tm, tn, tk = _tile(M, tm), _tile(N, tn), _tile(K, tk)
    return pl.pallas_call(
        _matmul_residual_kernel,
        out_shape=jax.ShapeDtypeStruct((M, N), x2d.dtype),
        grid=(M // tm, N // tn, K // tk),
        in_specs=[
            pl.BlockSpec((tm, tk), lambda i, j, k: (i, k)),
            pl.BlockSpec((tk, tn), lambda i, j, k: (k, j)),
            pl.BlockSpec((tm, tn), lambda i, j, k: (i, j)),
        ],
        out_specs=pl.BlockSpec((tm, tn), lambda i, j, k: (i, j)),
        scratch_shapes=[pltpu.VMEM((tm, tn), jnp.float32)],
        compiler_params=pltpu.CompilerParams(
            dimension_semantics=("parallel", "parallel", "arbitrary")),
    )(x2d, w_t, residual)


def apply_rope(x, cos_c, sin_signed, tq=256):
    # x: (B, H, S, D); cos/sin: (B, S, D).  Applied once per head.
    B, H, S, D = x.shape
    tq = _tile(S, tq)
    return pl.pallas_call(
        _rope_kernel,
        out_shape=jax.ShapeDtypeStruct((B, H, S, D), x.dtype),
        grid=(B, H, S // tq),
        in_specs=[
            pl.BlockSpec((1, 1, tq, D), lambda b, h, si: (b, h, si, 0)),
            pl.BlockSpec((1, tq, D), lambda b, h, si: (b, si, 0)),
            pl.BlockSpec((1, tq, D), lambda b, h, si: (b, si, 0)),
        ],
        out_specs=pl.BlockSpec((1, 1, tq, D), lambda b, h, si: (b, h, si, 0)),
        compiler_params=pltpu.CompilerParams(
            dimension_semantics=("parallel", "parallel", "parallel")),
    )(x, cos_c, sin_signed)


def flash_attention(q, k, v, n_rep, tq=256, tkv=256):
    # q: (B, H, S, D); k, v: (B, Hkv, S, D).  GQA via index_map h // n_rep.
    B, H, S, D = q.shape
    tq, tkv = _tile(S, tq), _tile(S, tkv)
    scale = 1.0 / math.sqrt(D)
    return pl.pallas_call(
        functools.partial(_flash_attn_kernel, scale=scale),
        out_shape=jax.ShapeDtypeStruct((B, H, S, D), q.dtype),
        grid=(B, H, S // tq, S // tkv),
        in_specs=[
            pl.BlockSpec((1, 1, tq, D), lambda b, h, qi, ki: (b, h, qi, 0)),
            pl.BlockSpec((1, 1, tkv, D), lambda b, h, qi, ki: (b, h // n_rep, ki, 0)),
            pl.BlockSpec((1, 1, tkv, D), lambda b, h, qi, ki: (b, h // n_rep, ki, 0)),
        ],
        out_specs=pl.BlockSpec((1, 1, tq, D), lambda b, h, qi, ki: (b, h, qi, 0)),
        scratch_shapes=[
            pltpu.VMEM((tq, 1), jnp.float32),   # running max
            pltpu.VMEM((tq, 1), jnp.float32),   # running sum
            pltpu.VMEM((tq, D), jnp.float32),   # output accumulator
        ],
        compiler_params=pltpu.CompilerParams(
            dimension_semantics=("parallel", "parallel", "parallel", "arbitrary")),
    )(q, k, v)


# -------------------------- decoder layer forward -----------------------------

def combine_mrope(cos, sin, mrope_section, head_dim):
    # cos, sin: (3, B, S, D) -> (B, S, D), matching apply_multimodal_rotary_pos_emb
    sec = list(mrope_section) * 2
    idx = np.cumsum(sec)[:-1].tolist()
    cos_chunks = jnp.split(cos, idx, axis=-1)
    sin_chunks = jnp.split(sin, idx, axis=-1)
    cos_c = jnp.concatenate([m[i % 3] for i, m in enumerate(cos_chunks)], axis=-1)
    sin_c = jnp.concatenate([m[i % 3] for i, m in enumerate(sin_chunks)], axis=-1)
    # fold the rotate_half sign into sin so the kernel only needs [x2, x1]
    half = head_dim // 2
    sin_signed = jnp.concatenate([-sin_c[..., :half], sin_c[..., half:]], axis=-1)
    return cos_c, sin_signed


def decoder_layer_forward(params, cfg, hidden_states, cos, sin):
    B, S, Hd = hidden_states.shape
    nH = cfg["num_attention_heads"]
    nKV = cfg["num_key_value_heads"]
    hd = Hd // nH
    n_rep = nH // nKV
    eps = cfg["rms_norm_eps"]

    x2d = hidden_states.reshape(B * S, Hd)

    # --- self attention block (input RMSNorm fused into q/k/v projections) ---
    q = norm_linear_bias(x2d, params["input_ln_w"], params["q_w"], params["q_b"], eps)
    k = norm_linear_bias(x2d, params["input_ln_w"], params["k_w"], params["k_b"], eps)
    v = norm_linear_bias(x2d, params["input_ln_w"], params["v_w"], params["v_b"], eps)

    # TODO(synk): head-split transposes still run as XLA ops; they could be
    # folded into the attention BlockSpec index_maps for large shapes.
    q = q.reshape(B, S, nH, hd).transpose(0, 2, 1, 3)
    k = k.reshape(B, S, nKV, hd).transpose(0, 2, 1, 3)
    v = v.reshape(B, S, nKV, hd).transpose(0, 2, 1, 3)

    cos_c, sin_signed = combine_mrope(cos, sin, cfg["mrope_section"], hd)

    # RoPE applied once per q head and once per kv head (not n_rep times)
    q = apply_rope(q, cos_c, sin_signed)
    k = apply_rope(k, cos_c, sin_signed)

    attn = flash_attention(q, k, v, n_rep)                     # (B, nH, S, hd)
    attn2d = attn.transpose(0, 2, 1, 3).reshape(B * S, nH * hd)

    # o_proj with the residual add fused in
    h = matmul_residual(attn2d, params["o_w"], x2d)

    # --- MLP block (post RMSNorm + gate/up + SiLU fused; residual fused in down) ---
    act = norm_gate_up_silu(h, params["post_ln_w"], params["gate_w"],
                            params["up_w"], eps)
    out2d = matmul_residual(act, params["down_w"], h)

    return out2d.reshape(B, S, Hd)


# ----------------------------------- main --------------------------------------

if __name__ == "__main__":
    # small config consistent with a Qwen2.5-VL decoder layer
    cfg = dict(
        hidden_size=32,
        intermediate_size=64,
        num_attention_heads=4,
        num_key_value_heads=2,
        rms_norm_eps=1e-6,
        mrope_section=[2, 1, 1],   # sums to head_dim // 2 = 4
    )
    B, S = 2, 8
    Hd = cfg["hidden_size"]
    nH = cfg["num_attention_heads"]
    nKV = cfg["num_key_value_heads"]
    hd = Hd // nH
    I = cfg["intermediate_size"]

    key = jax.random.PRNGKey(0)
    ks = jax.random.split(key, 16)

    def init(k, shape, scale=0.05):
        return scale * jax.random.normal(k, shape, dtype=jnp.float32)

    params = dict(
        input_ln_w=jnp.ones((Hd,), jnp.float32),
        post_ln_w=jnp.ones((Hd,), jnp.float32),
        # weights pre-transposed to (in, out); pass bf16 here for production
        q_w=init(ks[0], (Hd, nH * hd)),
        q_b=init(ks[1], (nH * hd,)),
        k_w=init(ks[2], (Hd, nKV * hd)),
        k_b=init(ks[3], (nKV * hd,)),
        v_w=init(ks[4], (Hd, nKV * hd)),
        v_b=init(ks[5], (nKV * hd,)),
        o_w=init(ks[6], (nH * hd, Hd)),
        gate_w=init(ks[7], (Hd, I)),
        up_w=init(ks[8], (Hd, I)),
        down_w=init(ks[9], (I, Hd)),
    )

    hidden_states = jax.random.normal(ks[10], (B, S, Hd), dtype=jnp.float32)

    # multimodal rotary position embeddings: (3, B, S, head_dim)
    inv_freq = 1.0 / (10000.0 ** (np.arange(0, hd, 2, dtype=np.float32) / hd))
    pos = np.arange(S, dtype=np.float32)
    pos3 = np.stack([pos, pos // 2.0, pos // 3.0], axis=0)          # (3, S)
    freqs = pos3[:, None, :, None] * inv_freq[None, None, None, :]  # (3, 1, S, hd/2)
    freqs = np.broadcast_to(freqs, (3, B, S, hd // 2))
    emb = np.concatenate([freqs, freqs], axis=-1)                   # (3, B, S, hd)
    cos = jnp.asarray(np.cos(emb), dtype=jnp.float32)
    sin = jnp.asarray(np.sin(emb), dtype=jnp.float32)

    out = decoder_layer_forward(params, cfg, hidden_states, cos, sin)
    out = jax.block_until_ready(out)
    assert out.shape == (B, S, Hd)
    print("KERNEL_OK")
</pallas_src>

<mosaic_0001>
module attributes {stable_mosaic.version = 11 : i64} {
  func.func @_norm_linear_bias_kernel(%arg0: i32, %arg1: i32, %arg2: memref<16x32xf32, #tpu.memory_space<vmem>>, %arg3: memref<1x32xf32, #tpu.memory_space<vmem>>, %arg4: memref<32x32xf32, #tpu.memory_space<vmem>>, %arg5: memref<1x32xf32, #tpu.memory_space<vmem>>, %arg6: memref<16x32xf32, #tpu.memory_space<vmem>>) attributes {dimension_semantics = [#tpu.dimension_semantics<parallel>, #tpu.dimension_semantics<parallel>], iteration_bounds = array<i64: 1, 1>, scalar_prefetch = 0 : i64, scratch_operands = 0 : i64, tpu.core_type = #tpu.core_type<tc>, window_params = [{transform_indices = @transform_0, window_bounds = array<i64: 16, 32>}, {pipeline_mode = #tpu.pipeline_mode<synchronous>, transform_indices = @transform_1, window_bounds = array<i64: 1, 32>}, {transform_indices = @transform_2, window_bounds = array<i64: 32, 32>}, {transform_indices = @transform_3, window_bounds = array<i64: 1, 32>}, {transform_indices = @transform_4, window_bounds = array<i64: 16, 32>}]} {
    %c0 = arith.constant 0 : index
    %c0_0 = arith.constant 0 : index
    %0 = vector.load %arg2[%c0, %c0_0] : memref<16x32xf32, #tpu.memory_space<vmem>>, vector<16x32xf32>
    %1 = arith.mulf %0, %0 : vector<16x32xf32>
    %cst = arith.constant dense<0.000000e+00> : vector<16xf32>
    %2 = vector.multi_reduction <add>, %1, %cst [1] : vector<16x32xf32> to vector<16xf32>
    %3 = vector.shape_cast %2 : vector<16xf32> to vector<16x1xf32>
    %cst_1 = arith.constant 3.200000e+01 : f32
    %4 = vector.broadcast %cst_1 : f32 to vector<16x1xf32>
    %5 = arith.divf %3, %4 : vector<16x1xf32>
    %cst_2 = arith.constant 9.99999997E-7 : f32
    %6 = vector.broadcast %cst_2 : f32 to vector<16x1xf32>
    %7 = arith.addf %5, %6 : vector<16x1xf32>
    %8 = math.rsqrt %7 : vector<16x1xf32>
    %9 = vector.broadcast %8 : vector<16x1xf32> to vector<16x32xf32>
    %10 = arith.mulf %0, %9 : vector<16x32xf32>
    %c0_3 = arith.constant 0 : index
    %c0_4 = arith.constant 0 : index
    %11 = vector.load %arg3[%c0_3, %c0_4] : memref<1x32xf32, #tpu.memory_space<vmem>>, vector<1x32xf32>
    %12 = vector.broadcast %11 : vector<1x32xf32> to vector<16x32xf32>
    %13 = arith.mulf %10, %12 : vector<16x32xf32>
    %c0_5 = arith.constant 0 : index
    %c0_6 = arith.constant 0 : index
    %14 = vector.load %arg4[%c0_5, %c0_6] : memref<32x32xf32, #tpu.memory_space<vmem>>, vector<32x32xf32>
    %cst_7 = arith.constant dense<0.000000e+00> : vector<16x32xf32>
    %15 = tpu.matmul %13, %14, %cst_7 {dimension_numbers = #tpu.dot_dimension_numbers<[1], [0], [0], [1], [0, 0, 1, 1], [], []>} : vector<16x32xf32>, vector<32x32xf32>, vector<16x32xf32> -> vector<16x32xf32>
    %c0_8 = arith.constant 0 : index
    %c0_9 = arith.constant 0 : index
    %16 = vector.load %arg5[%c0_8, %c0_9] : memref<1x32xf32, #tpu.memory_space<vmem>>, vector<1x32xf32>
    %17 = vector.broadcast %16 : vector<1x32xf32> to vector<16x32xf32>
    %18 = arith.addf %15, %17 : vector<16x32xf32>
    %c0_10 = arith.constant 0 : index
    %c0_11 = arith.constant 0 : index
    %19 = vector.load %arg6[%c0_10, %c0_11] : memref<16x32xf32, #tpu.memory_space<vmem>>, vector<16x32xf32>
    tpu.vector_store %arg6[%c0_10, %c0_11], %18 {strides = array<i32>} : memref<16x32xf32, #tpu.memory_space<vmem>>, vector<16x32xf32>,
    return
  }
  func.func @transform_0(%arg0: i32, %arg1: i32) -> (i32, i32) {
    %c0_i32 = arith.constant 0 : i32
    %c0_i32_0 = arith.constant 0 : i32
    return %arg0, %c0_i32 : i32, i32
  }
  func.func @transform_1(%arg0: i32, %arg1: i32) -> (i32, i32) {
    %c0_i32 = arith.constant 0 : i32
    %c0_i32_0 = arith.constant 0 : i32
    %c0_i32_1 = arith.constant 0 : i32
    return %c0_i32, %c0_i32_0 : i32, i32
  }
  func.func @transform_2(%arg0: i32, %arg1: i32) -> (i32, i32) {
    %c0_i32 = arith.constant 0 : i32
    %c0_i32_0 = arith.constant 0 : i32
    return %c0_i32, %arg1 : i32, i32
  }
  func.func @transform_3(%arg0: i32, %arg1: i32) -> (i32, i32) {
    %c0_i32 = arith.constant 0 : i32
    %c0_i32_0 = arith.constant 0 : i32
    return %c0_i32, %arg1 : i32, i32
  }
  func.func @transform_4(%arg0: i32, %arg1: i32) -> (i32, i32) {
    %c0_i32 = arith.constant 0 : i32
    return %arg0, %arg1 : i32, i32
  }
}

</mosaic_0001>

<llo_original>
// kernel: tpu_custom_call.1
$region0: #{tpu_custom_call.1}
  #allocation0 [shape = 'u32[]', space=smem, size = 0x4, offset = 0x4, fixed_abs, tag = 'smem constant byte address 0x4 - core index']
  #allocation1 [shape = 'u32[144,128]{1,0:T(1,128)}', space=vmem, size = 0x12000, scoped, tag = 'internal scratch']
  %s0 = inlined_call_operand.hbm [shape: f32[16,32], index: 0, kind: input, shape index: {}]
  %s1 = inlined_call_operand.vmem [shape: f32[1,32], index: 1, kind: input, shape index: {}]
  %s2 = inlined_call_operand.hbm [shape: f32[32,32], index: 2, kind: input, shape index: {}]
  %s3 = inlined_call_operand.vmem [shape: f32[1,32], index: 3, kind: input, shape index: {}]
  %s4 = inlined_call_operand.hbm [shape: f32[16,32], index: 4, kind: output, shape index: {}]
  %s5 = sld [smem:[#allocation0]]
  $region34: #{tpu_custom_call.1} parent=0
    _
  %s7 = ssub.s32 1, %s5
  %s8 = scalar_select 0, %s7, %s5
  $region1: #{tpu_custom_call.1} parent=0
    #allocation2 [shape = 'u8[8192]{0}', space=vmem, size = 0x2000, scoped, tag = 'input window, operand 0, single buffered']
    #allocation3 [shape = 's32[1]{0}', space=sflag, size = 0x4, scoped, tag = 'scoped memory for tpu_custom_call.1']
    #allocation4 [shape = 's32[1]{0}', space=sflag, size = 0x4, scoped, tag = 'scoped memory for tpu_custom_call.1']
    #allocation5 [shape = 'u8[16384]{0}', space=vmem, size = 0x4000, scoped, tag = 'input window, operand 2, single buffered']
    #allocation6 [shape = 's32[1]{0}', space=sflag, size = 0x4, scoped, tag = 'scoped memory for tpu_custom_call.1']
    #allocation7 [shape = 'u8[8192]{0}', space=vmem, size = 0x2000, scoped, tag = 'output window, operand 0, single buffered']
    %9 = vsyncpa [#allocation3], 0
    %10 = vsyncpa [#allocation6], 0
    %11 = vsyncpa [#allocation4], 0
    // Predicated region
    $region2: #{tpu_custom_call.1} parent=1 // pred_check
      _
    $region3: #{tpu_custom_call.1} parent=1 // pred_check_branch
      %13 = sbr.rel (0) target = $region5
    $region4: #{tpu_custom_call.1} parent=1 // pred_region
      %s15 = ssub.s32 256, 256
      %16 = vsyncadd [#allocation3], %s15
      %s17 = sshll.u32 [#allocation2], 4
      %s18 = int_to_ptr.vmem [resolvable:$true] %s17
      %23 = dma.hbm_to_vmem [thread:$0]  %s0, 256, %s18, [#allocation3], 128, 128, 8
    $region5: #{tpu_custom_call.1} parent=1 // pred_fallthru
      _
    // Predicated region
    $region6: #{tpu_custom_call.1} parent=1 // pred_check
      _
    $region7: #{tpu_custom_call.1} parent=1 // pred_check_branch
      %25 = sbr.rel (0) target = $region9
    $region8: #{tpu_custom_call.1} parent=1 // pred_region
      _
    $region9: #{tpu_custom_call.1} parent=1 // pred_fallthru
      _
    // Predicated region
    $region10: #{tpu_custom_call.1} parent=1 // pred_check
      _
    $region11: #{tpu_custom_call.1} parent=1 // pred_check_branch
      %27 = sbr.rel (0) target = $region13
    $region12: #{tpu_custom_call.1} parent=1 // pred_region
      %s29 = ssub.s32 512, 512
      %30 = vsyncadd [#allocation6], %s29
      %s31 = sshll.u32 [#allocation5], 4
      %s32 = int_to_ptr.vmem [resolvable:$true] %s31
      %37 = dma.hbm_to_vmem [thread:$0]  %s2, 512, %s32, [#allocation6], 128, 128, 8
    $region13: #{tpu_custom_call.1} parent=1 // pred_fallthru
      _
    // Predicated region
    $region14: #{tpu_custom_call.1} parent=1 // pred_check
      _
    $region15: #{tpu_custom_call.1} parent=1 // pred_check_branch
      %39 = sbr.rel (0) target = $region17
    $region16: #{tpu_custom_call.1} parent=1 // pred_region
      _
    $region17: #{tpu_custom_call.1} parent=1 // pred_fallthru
      _
    // Predicated region
    $region18: #{tpu_custom_call.1} parent=1 // pred_check
      _
    $region19: #{tpu_custom_call.1} parent=1 // pred_check_branch
      %41 = sbr.rel (0) target = $region21
    $region20: #{tpu_custom_call.1} parent=1 // pred_region
      %42 = dma.done [#allocation3], 256
    $region21: #{tpu_custom_call.1} parent=1 // pred_fallthru
      _
    // Predicated region
    $region22: #{tpu_custom_call.1} parent=1 // pred_check
      _
    $region23: #{tpu_custom_call.1} parent=1 // pred_check_branch
      %44 = sbr.rel (0) target = $region25
    $region24: #{tpu_custom_call.1} parent=1 // pred_region
      %45 = dma.done [#allocation6], 512
    $region25: #{tpu_custom_call.1} parent=1 // pred_fallthru
      _
    %v46 = vld [vmem:[#allocation2] sm:$0xff]
    %v47 = vld [vmem:[#allocation2 + $0x8] sm:$0xff]
    %v48 = vmul.f32 %v46, %v46
    %v49 = vmul.f32 %v47, %v47
    %vm50 = vcmask 261120
    %v51 = vsel %vm50, %v48, 0.0
    %52 = vadd.xlane.f32.xlu0 %v51
    %v53 = vpop.xlane.xlu0 %52
    %v54 = vsel %vm50, %v49, 0.0
    %55 = vadd.xlane.f32.xlu0 %v54
    %v56 = vpop.xlane.xlu0 %55
    %v57 = vrcp.pop 32.0
    %v58 = vmul.f32 %v53, %v57
    %v59 = vmul.f32 %v56, %v57
    %v60 = vadd.f32 %v58, 1e-06
    %v61 = vadd.f32 %v59, 1e-06
    %v62 = vrsqrt.pop %v60
    %v63 = vrsqrt.pop %v61
    %v64 = vmul.f32 %v46, %v62
    %v65 = vmul.f32 %v47, %v63
    %v66 = vld [vmem:[%s1] sm:$0x1]
    %v68 = vlaneseq
    %v69 = vshrl.u32 %v68, 7
    %v70 = vsub.s32 0, %v69
    %v71 = vrot.slane %v66, %v70
    %v73 = vmul.f32 %v64, %v71
    %v74 = vmul.f32 %v65, %v71
    %v75 = vld [vmem:[#allocation5] sm:$0xff]
    %v76 = vld [vmem:[#allocation5 + $0x8] sm:$0xff]
    %v77 = vld [vmem:[#allocation5 + $0x10] sm:$0xff]
    %v78 = vld [vmem:[#allocation5 + $0x18] sm:$0xff]
    %v79 = vld [vmem:[%s3] sm:$0x1]
    %v81 = vlaneseq
    %v82 = vshrl.u32 %v81, 7
    %v83 = vsub.s32 0, %v82
    %v84 = vrot.slane %v79, %v83
    %v87 = vsel %vm50, %v73, 0
    %v90 = vsel %vm50, %v74, 0
    %92 = vmatprep.subr.mxu0 0.0
    %93 = vmatpush1.msra.mxu0 0.0
    %94 = vmatprep.subr.mxu0 0.0
    %95 = vmatpush1.msra.mxu0 0.0
    %96 = vmatprep.subr.mxu0 0.0
    %97 = vmatpush1.msra.mxu0 0.0
    %98 = vmatprep.subr.mxu0 0.0
    %99 = vmatpush1.msra.mxu0 0.0
    %100 = vmatprep.subr.mxu0 0.0
    %101 = vmatpush1.msra.mxu0 0.0
    %102 = vmatprep.subr.mxu0 0.0
    %103 = vmatpush1.msra.mxu0 0.0
    %104 = vmatprep.subr.mxu0 0.0
    %105 = vmatpush1.msra.mxu0 0.0
    %106 = vmatprep.subr.mxu0 0.0
    %107 = vmatpush1.msra.mxu0 0.0
    %108 = vmatprep.subr.mxu0 0.0
    %109 = vmatpush1.msra.mxu0 0.0
    %110 = vmatprep.subr.mxu0 0.0
    %111 = vmatpush1.msra.mxu0 0.0
    %112 = vmatprep.subr.mxu0 0.0
    %113 = vmatpush1.msra.mxu0 0.0
    %114 = vmatprep.subr.mxu0 0.0
    %115 = vmatpush1.msra.mxu0 0.0
    %116 = vmatprep.subr.mxu0 0.0
    %117 = vmatpush1.msra.mxu0 %v78
    %118 = vmatprep.subr.mxu0 0.0
    %119 = vmatpush1.msra.mxu0 %v77
    %120 = vmatprep.subr.mxu0 0.0
    %121 = vmatpush1.msra.mxu0 %v76
    %122 = vmatprep.subr.mxu0 0.0
    %123 = vmatpush1.msra.mxu0 %v75
    %124 = vmatprep.subr.mxu0 0.0
    %125 = vmatpush2.msra.mxu0 0.0
    %126 = vmatprep.subr.mxu0 0.0
    %127 = vmatpush2.msra.mxu0 0.0
    %128 = vmatprep.subr.mxu0 0.0
    %129 = vmatpush2.msra.mxu0 0.0
    %130 = vmatprep.subr.mxu0 0.0
    %131 = vmatpush2.msra.mxu0 0.0
    %132 = vmatprep.subr.mxu0 0.0
    %133 = vmatpush2.msra.mxu0 0.0
    %134 = vmatprep.subr.mxu0 0.0
    %135 = vmatpush2.msra.mxu0 0.0
    %136 = vmatprep.subr.mxu0 0.0
    %137 = vmatpush2.msra.mxu0 0.0
    %138 = vmatprep.subr.mxu0 0.0
    %139 = vmatpush2.msra.mxu0 0.0
    %140 = vmatprep.subr.mxu0 0.0
    %141 = vmatpush2.msra.mxu0 0.0
    %142 = vmatprep.subr.mxu0 0.0
    %143 = vmatpush2.msra.mxu0 0.0
    %144 = vmatprep.subr.mxu0 0.0
    %145 = vmatpush2.msra.mxu0 0.0
    %146 = vmatprep.subr.mxu0 0.0
    %147 = vmatpush2.msra.mxu0 0.0
    %148 = vmatprep.subr.mxu0 0.0
    %149 = vmatpush2.msra.mxu0 0.0
    %150 = vmatprep.subr.mxu0 0.0
    %151 = vmatpush2.msra.mxu0 0.0
    %152 = vmatprep.subr.mxu0 0.0
    %153 = vmatpush2.msra.mxu0 0.0
    %154 = vmatprep.subr.mxu0 0.0
    %155 = vmatpush2.msra.mxu0 0.0
    %156 = vmatprep.mubr.f32.mxu0 0.0
    %157 = vmatmul.mubr.f32.gmra.mxu0 %v87
    %v158 = vpop.f32.mrf.mxu0
    %v159 = vadd.f32 %v84, %v158
    %v160 = vpop.f32.mrf.mxu0
    %161 = vmatprep.mubr.f32.mxu0 0.0
    %162 = vmatmul.mubr.f32.gmra.mxu0 %v90
    %v163 = vpop.f32.mrf.mxu0
    %v164 = vadd.f32 %v84, %v163
    %v165 = vpop.f32.mrf.mxu0
    %166 = vdwg.mxu0
    %167 = vst.msk [vmem:[#allocation7] sm:$0xff] %vm50, %v159
    %168 = vst.msk [vmem:[#allocation7 + $0x8] sm:$0xff] %vm50, %v164
    // Predicated region
    $region26: #{tpu_custom_call.1} parent=1 // pred_check
      _
    $region27: #{tpu_custom_call.1} parent=1 // pred_check_branch
      %170 = sbr.rel (0) target = $region29
    $region28: #{tpu_custom_call.1} parent=1 // pred_region
      %s172 = ssub.s32 256, 256
      %173 = vsyncadd [#allocation4], %s172
      %s174 = sshll.u32 [#allocation7], 4
      %s175 = int_to_ptr.vmem [resolvable:$true] %s174
      %180 = dma.vmem_to_hbm [thread:$0]  %s175, 256, %s4, [#allocation4], 128, 128, 8
    $region29: #{tpu_custom_call.1} parent=1 // pred_fallthru
      _
    // Predicated region
    $region30: #{tpu_custom_call.1} parent=1 // pred_check
      _
    $region31: #{tpu_custom_call.1} parent=1 // pred_check_branch
      %182 = sbr.rel (0) target = $region33
    $region32: #{tpu_custom_call.1} parent=1 // pred_region
      %183 = dma.done [#allocation4], 256
    $region33: #{tpu_custom_call.1} parent=1 // pred_fallthru
      _
    %184 = vsyncpa [#allocation3], 1
    %185 = vsyncpa [#allocation6], 1
    %186 = vsyncpa [#allocation4], 1

</llo_original>
